<compile_context>
chip_gen: v7x
topology: tpu7x:2x2x1
jax: 0.10.0
libtpu: 0.0.40
codegen_flags: <defaults>
</compile_context>

<pallas_src>
import functools

import jax
import jax.numpy as jnp
from jax import lax
from jax.experimental import pallas as pl
from jax.experimental.pallas import tpu as pltpu


_SQRT_HALF = 0.7071067811865476


def _gelu_exact(x):
    # Matches torch.nn.functional.gelu default (erf form).
    return 0.5 * x * (1.0 + lax.erf(x * _SQRT_HALF))


def _round_up(x, m):
    return (x + m - 1) // m * m


# ------------------------------- Pallas kernel --------------------------------

def _batch_encoder_cat_kernel(idx_ref, fused_ref, p_ref, out_ref,
                              *, offsets, total, ln_eps):
    """Refs:
         idx_ref   : (TB, F)   int32  per-feature category indices
         fused_ref : (total, n_output) f32  stacked (table_f @ W_f.T)
         p_ref     : (3, n_output) f32  rows = [bias, ln_gamma, ln_beta]
         out_ref   : (TB, n_output) f32
    """
    tb = idx_ref.shape[0]
    idx = idx_ref[...]                                           # (TB, F) int32

    # Multi-hot over the stacked embedding rows.  Per-feature column ranges are
    # disjoint, so summing the per-feature one-hots gives the exact multi-hot.
    iota = lax.broadcasted_iota(jnp.int32, (tb, total), 1)       # (TB, total)
    mh = jnp.zeros((tb, total), jnp.float32)
    for f in range(len(offsets)):                                # static unroll, F small
        col = idx[:, f:f + 1] + offsets[f]                       # (TB, 1)
        mh = mh + (iota == col).astype(jnp.float32)

    # One MXU matmul does (embedding lookup + hstack + Linear-matmul) at once.
    acc = jnp.dot(mh, fused_ref[...], preferred_element_type=jnp.float32)

    h = acc + p_ref[0:1, :]                                      # + Linear bias

    # LayerNorm(n_output), eps matches torch default 1e-5.
    mu = jnp.mean(h, axis=-1, keepdims=True)
    xc = h - mu
    var = jnp.mean(xc * xc, axis=-1, keepdims=True)
    y = xc * lax.rsqrt(var + ln_eps) * p_ref[1:2, :] + p_ref[2:3, :]

    # GELU; Dropout is identity at inference.
    out_ref[...] = _gelu_exact(y)


# ------------------------- one-time setup + forward ---------------------------

def make_batch_encoder_cat(n_cat_list, n_embed, n_output, params,
                           *, block_tb=512, ln_eps=1e-5):
    """One-time host preprocessing (fusion / packing), returns the forward fn.

       params = (tables, w_lin, b_lin, ln_w, ln_b):
         tables : tuple of (n_cat_list[f], n_embed) f32
         w_lin  : (n_output, F * n_embed) f32   (PyTorch Linear layout)
         b_lin, ln_w, ln_b : (n_output,) f32
    """
    tables, w_lin, b_lin, ln_w, ln_b = params
    n_feat = len(n_cat_list)

    # Fuse each table with its Linear slice: table_f @ W_f.T -> (n_emb_f, n_output),
    # stack along rows -> (total, n_output).  Done once, at model build time.
    fused = jnp.concatenate(
        [jnp.matmul(tables[f],
                    jnp.transpose(w_lin[:, f * n_embed:(f + 1) * n_embed]),
                    precision=lax.Precision.HIGHEST)
         for f in range(n_feat)],
        axis=0)

    offsets = [0]
    for n in n_cat_list[:-1]:
        offsets.append(offsets[-1] + n)
    offsets = tuple(offsets)
    total = int(sum(n_cat_list))

    params_packed = jnp.stack([b_lin, ln_w, ln_b], axis=0)       # (3, n_output)
    ones_weights = jnp.ones((n_feat,), jnp.float32)

    kernel = functools.partial(
        _batch_encoder_cat_kernel, offsets=offsets, total=total, ln_eps=ln_eps)

    def forward(batch_factors):
        batch = batch_factors.shape[0]
        idx = batch_factors.astype(jnp.int32)                    # module does .long()

        # Batch tile: multiple of 8 sublanes, capped so double-buffered blocks
        # stay far below the 64 MiB v7x VMEM (and the 32 MiB scoped default).
        tb = min(block_tb, _round_up(batch, 8))
        batch_p = _round_up(batch, tb)
        if batch_p != batch:
            idx = jnp.pad(idx, ((0, batch_p - batch), (0, 0)))   # pad with index 0

        out = pl.pallas_call(
            kernel,
            out_shape=jax.ShapeDtypeStruct((batch_p, n_output), jnp.float32),
            grid=(batch_p // tb,),
            in_specs=[
                pl.BlockSpec((tb, n_feat), lambda i: (i, 0)),        # indices: tiled
                pl.BlockSpec((total, n_output), lambda i: (0, 0)),   # fused table: resident
                pl.BlockSpec((3, n_output), lambda i: (0, 0)),       # bias/ln params: resident
            ],
            out_specs=pl.BlockSpec((tb, n_output), lambda i: (i, 0)),
            compiler_params=pltpu.CompilerParams(
                dimension_semantics=("parallel",)),
        )(idx, fused, params_packed)

        if batch_p != batch:
            out = out[:batch]
        return out, ones_weights

    return forward


# ----------------------------- pure-JAX reference ------------------------------

def _ref_forward(batch_factors, params):
    tables, w_lin, b_lin, ln_w, ln_b = params
    n_feat = len(tables)
    idx = batch_factors.astype(jnp.int32)
    embeds = [tables[f][idx[:, f]] for f in range(n_feat)]       # Embedding lookups
    x = jnp.concatenate(embeds, axis=-1)                         # torch.hstack
    h = jnp.matmul(x, w_lin.T, precision=lax.Precision.HIGHEST) + b_lin
    mu = h.mean(-1, keepdims=True)
    var = ((h - mu) ** 2).mean(-1, keepdims=True)
    y = (h - mu) / jnp.sqrt(var + 1e-5) * ln_w + ln_b            # LayerNorm
    out = _gelu_exact(y)                                         # GELU (Dropout = id)
    return out, jnp.ones((n_feat,), jnp.float32)


# ----------------------------------- main ---------------------------------------

if __name__ == "__main__":
    # batch_encoder_cat(n_cat_list=[10, 7, 5], n_embed=32, n_output=128, p_drop=0.1)
    n_cat_list = [10, 7, 5]
    n_embed, n_output = 32, 128
    batch = 8

    root = jax.random.PRNGKey(0)
    k_tab, k_w, k_b, k_idx = jax.random.split(root, 4)

    tab_keys = jax.random.split(k_tab, len(n_cat_list))
    tables = tuple(
        jax.random.normal(tab_keys[f], (n_cat_list[f], n_embed), jnp.float32)
        for f in range(len(n_cat_list)))

    f_in = len(n_cat_list) * n_embed
    w_lin = 0.05 * jax.random.normal(k_w, (n_output, f_in), jnp.float32)
    b_lin = 0.05 * jax.random.normal(k_b, (n_output,), jnp.float32)
    ln_w = jnp.ones((n_output,), jnp.float32)
    ln_b = jnp.zeros((n_output,), jnp.float32)
    params = (tables, w_lin, b_lin, ln_w, ln_b)

    # Categorical factors given as floats (the module casts with .long()).
    maxes = jnp.array(n_cat_list, jnp.int32)
    batch_factors = (
        jax.random.randint(k_idx, (batch, len(n_cat_list)), 0, 1_000_000) % maxes
    ).astype(jnp.float32)

    forward = make_batch_encoder_cat(n_cat_list, n_embed, n_output, params)
    out, weights = forward(batch_factors)
    out = jax.block_until_ready(out)

    ref_out, ref_w = _ref_forward(batch_factors, params)
    assert out.shape == (batch, n_output)
    assert weights.shape == (len(n_cat_list),)
    assert jnp.allclose(out, ref_out, rtol=1e-3, atol=1e-3), "mismatch vs JAX reference"
    assert jnp.allclose(weights, ref_w)

    print("KERNEL_OK")
</pallas_src>

<mosaic_0001>
module attributes {stable_mosaic.version = 11 : i64} {
  func.func @_batch_encoder_cat_kernel(%arg0: i32, %arg1: memref<8x3xi32, #tpu.memory_space<vmem>>, %arg2: memref<22x128xf32, #tpu.memory_space<vmem>>, %arg3: memref<3x128xf32, #tpu.memory_space<vmem>>, %arg4: memref<8x128xf32, #tpu.memory_space<vmem>>) attributes {dimension_semantics = [#tpu.dimension_semantics<parallel>], iteration_bounds = array<i64: 1>, scalar_prefetch = 0 : i64, scratch_operands = 0 : i64, tpu.core_type = #tpu.core_type<tc>, window_params = [{transform_indices = @transform_0, window_bounds = array<i64: 8, 3>}, {pipeline_mode = #tpu.pipeline_mode<synchronous>, transform_indices = @transform_1, window_bounds = array<i64: 22, 128>}, {pipeline_mode = #tpu.pipeline_mode<synchronous>, transform_indices = @transform_2, window_bounds = array<i64: 3, 128>}, {transform_indices = @transform_3, window_bounds = array<i64: 8, 128>}]} {
    %c0 = arith.constant 0 : index
    %c0_0 = arith.constant 0 : index
    %0 = vector.load %arg1[%c0, %c0_0] : memref<8x3xi32, #tpu.memory_space<vmem>>, vector<8x3xi32>
    %1 = tpu.iota {dimensions = array<i32: 1>} : vector<8x22xi32>
    %cst = arith.constant 0.000000e+00 : f32
    %2 = vector.broadcast %cst : f32 to vector<8x22xf32>
    %3 = vector.extract_strided_slice %0 {offsets = [0, 0], sizes = [8, 1], strides = [1, 1]} : vector<8x3xi32> to vector<8x1xi32>
    %c0_i32 = arith.constant 0 : i32
    %4 = vector.broadcast %c0_i32 : i32 to vector<8x1xi32>
    %5 = arith.addi %3, %4 : vector<8x1xi32>
    %6 = vector.broadcast %5 : vector<8x1xi32> to vector<8x22xi32>
    %7 = arith.cmpi eq, %1, %6 : vector<8x22xi32>
    %8 = arith.extui %7 : vector<8x22xi1> to vector<8x22xi32>
    %9 = arith.sitofp %8 : vector<8x22xi32> to vector<8x22xf32>
    %10 = arith.addf %2, %9 : vector<8x22xf32>
    %11 = vector.extract_strided_slice %0 {offsets = [0, 1], sizes = [8, 1], strides = [1, 1]} : vector<8x3xi32> to vector<8x1xi32>
    %c10_i32 = arith.constant 10 : i32
    %12 = vector.broadcast %c10_i32 : i32 to vector<8x1xi32>
    %13 = arith.addi %11, %12 : vector<8x1xi32>
    %14 = vector.broadcast %13 : vector<8x1xi32> to vector<8x22xi32>
    %15 = arith.cmpi eq, %1, %14 : vector<8x22xi32>
    %16 = arith.extui %15 : vector<8x22xi1> to vector<8x22xi32>
    %17 = arith.sitofp %16 : vector<8x22xi32> to vector<8x22xf32>
    %18 = arith.addf %10, %17 : vector<8x22xf32>
    %19 = vector.extract_strided_slice %0 {offsets = [0, 2], sizes = [8, 1], strides = [1, 1]} : vector<8x3xi32> to vector<8x1xi32>
    %c17_i32 = arith.constant 17 : i32
    %20 = vector.broadcast %c17_i32 : i32 to vector<8x1xi32>
    %21 = arith.addi %19, %20 : vector<8x1xi32>
    %22 = vector.broadcast %21 : vector<8x1xi32> to vector<8x22xi32>
    %23 = arith.cmpi eq, %1, %22 : vector<8x22xi32>
    %24 = arith.extui %23 : vector<8x22xi1> to vector<8x22xi32>
    %25 = arith.sitofp %24 : vector<8x22xi32> to vector<8x22xf32>
    %26 = arith.addf %18, %25 : vector<8x22xf32>
    %c0_1 = arith.constant 0 : index
    %c0_2 = arith.constant 0 : index
    %27 = vector.load %arg2[%c0_1, %c0_2] : memref<22x128xf32, #tpu.memory_space<vmem>>, vector<22x128xf32>
    %cst_3 = arith.constant dense<0.000000e+00> : vector<8x128xf32>
    %28 = tpu.matmul %26, %27, %cst_3 {dimension_numbers = #tpu.dot_dimension_numbers<[1], [0], [0], [1], [0, 0, 1, 1], [], []>} : vector<8x22xf32>, vector<22x128xf32>, vector<8x128xf32> -> vector<8x128xf32>
    %c0_4 = arith.constant 0 : index
    %c0_5 = arith.constant 0 : index
    %29 = vector.load %arg3[%c0_4, %c0_5] : memref<3x128xf32, #tpu.memory_space<vmem>>, vector<1x128xf32>
    %30 = vector.broadcast %29 : vector<1x128xf32> to vector<8x128xf32>
    %31 = arith.addf %28, %30 : vector<8x128xf32>
    %cst_6 = arith.constant dense<0.000000e+00> : vector<8xf32>
    %32 = vector.multi_reduction <add>, %31, %cst_6 [1] : vector<8x128xf32> to vector<8xf32>
    %33 = vector.shape_cast %32 : vector<8xf32> to vector<8x1xf32>
    %cst_7 = arith.constant 1.280000e+02 : f32
    %34 = vector.broadcast %cst_7 : f32 to vector<8x1xf32>
    %35 = arith.divf %33, %34 : vector<8x1xf32>
    %36 = vector.broadcast %35 : vector<8x1xf32> to vector<8x128xf32>
    %37 = arith.subf %31, %36 : vector<8x128xf32>
    %38 = arith.mulf %37, %37 : vector<8x128xf32>
    %cst_8 = arith.constant dense<0.000000e+00> : vector<8xf32>
    %39 = vector.multi_reduction <add>, %38, %cst_8 [1] : vector<8x128xf32> to vector<8xf32>
    %40 = vector.shape_cast %39 : vector<8xf32> to vector<8x1xf32>
    %cst_9 = arith.constant 1.280000e+02 : f32
    %41 = vector.broadcast %cst_9 : f32 to vector<8x1xf32>
    %42 = arith.divf %40, %41 : vector<8x1xf32>
    %cst_10 = arith.constant 9.99999974E-6 : f32
    %43 = vector.broadcast %cst_10 : f32 to vector<8x1xf32>
    %44 = arith.addf %42, %43 : vector<8x1xf32>
    %45 = math.rsqrt %44 : vector<8x1xf32>
    %46 = vector.broadcast %45 : vector<8x1xf32> to vector<8x128xf32>
    %47 = arith.mulf %37, %46 : vector<8x128xf32>
    %c1 = arith.constant 1 : index
    %c0_11 = arith.constant 0 : index
    %48 = vector.load %arg3[%c1, %c0_11] : memref<3x128xf32, #tpu.memory_space<vmem>>, vector<1x128xf32>
    %49 = vector.broadcast %48 : vector<1x128xf32> to vector<8x128xf32>
    %50 = arith.mulf %47, %49 : vector<8x128xf32>
    %c2 = arith.constant 2 : index
    %c0_12 = arith.constant 0 : index
    %51 = vector.load %arg3[%c2, %c0_12] : memref<3x128xf32, #tpu.memory_space<vmem>>, vector<1x128xf32>
    %52 = vector.broadcast %51 : vector<1x128xf32> to vector<8x128xf32>
    %53 = arith.addf %50, %52 : vector<8x128xf32>
    %cst_13 = arith.constant 5.000000e-01 : f32
    %54 = vector.broadcast %cst_13 : f32 to vector<8x128xf32>
    %55 = arith.mulf %54, %53 : vector<8x128xf32>
    %cst_14 = arith.constant 0.707106769 : f32
    %56 = vector.broadcast %cst_14 : f32 to vector<8x128xf32>
    %57 = arith.mulf %53, %56 : vector<8x128xf32>
    %58 = math.erf %57 : vector<8x128xf32>
    %cst_15 = arith.constant 1.000000e+00 : f32
    %59 = vector.broadcast %cst_15 : f32 to vector<8x128xf32>
    %60 = arith.addf %59, %58 : vector<8x128xf32>
    %61 = arith.mulf %55, %60 : vector<8x128xf32>
    %c0_16 = arith.constant 0 : index
    %c0_17 = arith.constant 0 : index
    %62 = vector.load %arg4[%c0_16, %c0_17] : memref<8x128xf32, #tpu.memory_space<vmem>>, vector<8x128xf32>
    tpu.vector_store %arg4[%c0_16, %c0_17], %61 {strides = array<i32>} : memref<8x128xf32, #tpu.memory_space<vmem>>, vector<8x128xf32>,
    return
  }
  func.func @transform_0(%arg0: i32) -> (i32, i32) {
    %c0_i32 = arith.constant 0 : i32
    %c0_i32_0 = arith.constant 0 : i32
    return %arg0, %c0_i32 : i32, i32
  }
  func.func @transform_1(%arg0: i32) -> (i32, i32) {
    %c0_i32 = arith.constant 0 : i32
    %c0_i32_0 = arith.constant 0 : i32
    %c0_i32_1 = arith.constant 0 : i32
    return %c0_i32, %c0_i32_0 : i32, i32
  }
  func.func @transform_2(%arg0: i32) -> (i32, i32) {
    %c0_i32 = arith.constant 0 : i32
    %c0_i32_0 = arith.constant 0 : i32
    %c0_i32_1 = arith.constant 0 : i32
    return %c0_i32, %c0_i32_0 : i32, i32
  }
  func.func @transform_3(%arg0: i32) -> (i32, i32) {
    %c0_i32 = arith.constant 0 : i32
    %c0_i32_0 = arith.constant 0 : i32
    return %arg0, %c0_i32 : i32, i32
  }
}

</mosaic_0001>

<llo_original>
// kernel: tpu_custom_call.1
$region0: #{tpu_custom_call.1}
  #allocation0 [shape = 'u32[]', space=smem, size = 0x4, offset = 0x4, fixed_abs, tag = 'smem constant byte address 0x4 - core index']
  #allocation1 [shape = 'u32[144,128]{1,0:T(1,128)}', space=vmem, size = 0x12000, scoped, tag = 'internal scratch']
  %s0 = inlined_call_operand.vmem [shape: s32[8,3], index: 0, kind: input, shape index: {}]
  %s1 = inlined_call_operand.hbm [shape: f32[22,128], index: 1, kind: input, shape index: {}]
  %s2 = inlined_call_operand.vmem [shape: f32[3,128], index: 2, kind: input, shape index: {}]
  %s3 = inlined_call_operand.hbm [shape: f32[8,128], index: 3, kind: output, shape index: {}]
  %s4 = sld [smem:[#allocation0]]
  $region26: #{tpu_custom_call.1} parent=0
    _
  %s6 = ssub.s32 1, %s4
  %s7 = scalar_select 0, %s6, %s4
  $region1: #{tpu_custom_call.1} parent=0
    #allocation2 [shape = 'u8[12288]{0}', space=vmem, size = 0x3000, scoped, tag = 'input window, operand 1, single buffered']
    #allocation3 [shape = 's32[1]{0}', space=sflag, size = 0x4, scoped, tag = 'scoped memory for tpu_custom_call.1']
    #allocation4 [shape = 's32[1]{0}', space=sflag, size = 0x4, scoped, tag = 'scoped memory for tpu_custom_call.1']
    #allocation5 [shape = 'u8[4096]{0}', space=vmem, size = 0x1000, scoped, tag = 'output window, operand 0, single buffered']
    %8 = vsyncpa [#allocation3], 0
    %9 = vsyncpa [#allocation4], 0
    // Predicated region
    $region2: #{tpu_custom_call.1} parent=1 // pred_check
      _
    $region3: #{tpu_custom_call.1} parent=1 // pred_check_branch
      %11 = sbr.rel (0) target = $region5
    $region4: #{tpu_custom_call.1} parent=1 // pred_region
      _
    $region5: #{tpu_custom_call.1} parent=1 // pred_fallthru
      _
    // Predicated region
    $region6: #{tpu_custom_call.1} parent=1 // pred_check
      _
    $region7: #{tpu_custom_call.1} parent=1 // pred_check_branch
      %13 = sbr.rel (0) target = $region9
    $region8: #{tpu_custom_call.1} parent=1 // pred_region
      %s15 = ssub.s32 384, 384
      %16 = vsyncadd [#allocation3], %s15
      %s17 = sshll.u32 [#allocation2], 4
      %s18 = int_to_ptr.vmem [resolvable:$true] %s17
      %23 = dma.hbm_to_vmem [thread:$0]  %s1, 384, %s18, [#allocation3], 128, 128, 8
    $region9: #{tpu_custom_call.1} parent=1 // pred_fallthru
      _
    // Predicated region
    $region10: #{tpu_custom_call.1} parent=1 // pred_check
      _
    $region11: #{tpu_custom_call.1} parent=1 // pred_check_branch
      %25 = sbr.rel (0) target = $region13
    $region12: #{tpu_custom_call.1} parent=1 // pred_region
      _
    $region13: #{tpu_custom_call.1} parent=1 // pred_fallthru
      _
    // Predicated region
    $region14: #{tpu_custom_call.1} parent=1 // pred_check
      _
    $region15: #{tpu_custom_call.1} parent=1 // pred_check_branch
      %27 = sbr.rel (0) target = $region17
    $region16: #{tpu_custom_call.1} parent=1 // pred_region
      %28 = dma.done [#allocation3], 384
    $region17: #{tpu_custom_call.1} parent=1 // pred_fallthru
      _
    %v29 = vld [vmem:[%s0] sm:$0xff]
    %v30 = vlaneseq
    %v31 = vand.u32 %v30, 127
    %32 = vset.pattern.permute.xlu0 0
    %33 = vperm.xlu0 %32, %v29
    %v34 = vpop.permute.xlu0 %33
    %vm35 = vcmp.eq.s32.totalorder %v31, %v34
    %v36 = vsel %vm35, 1, 0
    %v37 = vcvt.s32.f32 %v36
    %v38 = vadd.f32 %v37, 0.0
    %v39 = vadd.s32 %v29, 10
    %40 = vset.pattern.permute.xlu0 1
    %41 = vperm.xlu0 %40, %v39
    %v42 = vpop.permute.xlu0 %41
    %vm43 = vcmp.eq.s32.totalorder %v31, %v42
    %v44 = vsel %vm43, 1, 0
    %v45 = vcvt.s32.f32 %v44
    %v46 = vadd.f32 %v38, %v45
    %v47 = vadd.s32 %v29, 17
    %48 = vset.pattern.permute.xlu0 2
    %49 = vperm.xlu0 %48, %v47
    %v50 = vpop.permute.xlu0 %49
    %vm51 = vcmp.eq.s32.totalorder %v31, %v50
    %v52 = vsel %vm51, 1, 0
    %v53 = vcvt.s32.f32 %v52
    %v54 = vadd.f32 %v46, %v53
    %v55 = vld [vmem:[#allocation2] sm:$0xff]
    %v56 = vld [vmem:[#allocation2 + $0x8] sm:$0xff]
    %v57 = vld [vmem:[#allocation2 + $0x10] sm:$0x3f]
    %v58 = vld [vmem:[%s2] sm:$0x1]
    %v59 = vlaneseq
    %v60 = vshrl.u32 %v59, 7
    %v61 = vsub.s32 0, %v60
    %v62 = vrot.slane %v58, %v61
    %vm63 = vcmask 179200
    %v65 = vsel %vm63, %v54, 0
    %vm67 = vcmask 1045504
    %v69 = vsel %vm67, %v57, 0
    %71 = vmatprep.subr.mxu0 0.0
    %72 = vmatpush1.msra.mxu0 %v55
    %73 = vmatprep.subr.mxu0 0.0
    %74 = vmatpush1.msra.mxu0 %v56
    %75 = vmatprep.subr.mxu0 0.0
    %76 = vmatpush1.msra.mxu0 %v69
    %77 = vmatprep.subr.mxu0 0.0
    %78 = vmatpush1.msra.mxu0 0.0
    %79 = vmatprep.subr.mxu0 0.0
    %80 = vmatpush1.msra.mxu0 0.0
    %81 = vmatprep.subr.mxu0 0.0
    %82 = vmatpush1.msra.mxu0 0.0
    %83 = vmatprep.subr.mxu0 0.0
    %84 = vmatpush1.msra.mxu0 0.0
    %85 = vmatprep.subr.mxu0 0.0
    %86 = vmatpush1.msra.mxu0 0.0
    %87 = vmatprep.subr.mxu0 0.0
    %88 = vmatpush1.msra.mxu0 0.0
    %89 = vmatprep.subr.mxu0 0.0
    %90 = vmatpush1.msra.mxu0 0.0
    %91 = vmatprep.subr.mxu0 0.0
    %92 = vmatpush1.msra.mxu0 0.0
    %93 = vmatprep.subr.mxu0 0.0
    %94 = vmatpush1.msra.mxu0 0.0
    %95 = vmatprep.subr.mxu0 0.0
    %96 = vmatpush1.msra.mxu0 0.0
    %97 = vmatprep.subr.mxu0 0.0
    %98 = vmatpush1.msra.mxu0 0.0
    %99 = vmatprep.subr.mxu0 0.0
    %100 = vmatpush1.msra.mxu0 0.0
    %101 = vmatprep.subr.mxu0 0.0
    %102 = vmatpush1.msra.mxu0 0.0
    %103 = vmatprep.subr.mxu0 0.0
    %104 = vmatpush1.msra.mxu0 0.0
    %105 = vmatprep.subr.mxu0 0.0
    %106 = vmatpush1.msra.mxu0 0.0
    %107 = vmatprep.subr.mxu0 0.0
    %108 = vmatpush1.msra.mxu0 0.0
    %109 = vmatprep.subr.mxu0 0.0
    %110 = vmatpush1.msra.mxu0 0.0
    %111 = vmatprep.subr.mxu0 0.0
    %112 = vmatpush1.msra.mxu0 0.0
    %113 = vmatprep.subr.mxu0 0.0
    %114 = vmatpush1.msra.mxu0 0.0
    %115 = vmatprep.subr.mxu0 0.0
    %116 = vmatpush1.msra.mxu0 0.0
    %117 = vmatprep.subr.mxu0 0.0
    %118 = vmatpush1.msra.mxu0 0.0
    %119 = vmatprep.subr.mxu0 0.0
    %120 = vmatpush1.msra.mxu0 0.0
    %121 = vmatprep.subr.mxu0 0.0
    %122 = vmatpush1.msra.mxu0 0.0
    %123 = vmatprep.subr.mxu0 0.0
    %124 = vmatpush1.msra.mxu0 0.0
    %125 = vmatprep.subr.mxu0 0.0
    %126 = vmatpush1.msra.mxu0 0.0
    %127 = vmatprep.subr.mxu0 0.0
    %128 = vmatpush1.msra.mxu0 0.0
    %129 = vmatprep.subr.mxu0 0.0
    %130 = vmatpush1.msra.mxu0 0.0
    %131 = vmatprep.subr.mxu0 0.0
    %132 = vmatpush1.msra.mxu0 0.0
    %133 = vmatprep.subr.mxu0 0.0
    %134 = vmatpush1.msra.mxu0 0.0
    %135 = vmatprep.mubr.f32.mxu0 0.0
    %136 = vmatmul.mubr.f32.gmra.mrb[0].mxu0 %v65
    %v137 = vpop.f32.mrb[0].mxu0
    %v138 = vadd.f32 %v62, %v137
    %v139 = vpop.f32.mrb[0].mxu0
    %140 = vdwg.mxu0
    %141 = vadd.xlane.f32.xlu0 %v138
    %v142 = vpop.xlane.xlu0 %141
    %v143 = vrcp.pop 128.0
    %v144 = vmul.f32 %v142, %v143
    %v145 = vsub.f32 %v138, %v144
    %v146 = vmul.f32 %v145, %v145
    %147 = vadd.xlane.f32.xlu0 %v146
    %v148 = vpop.xlane.xlu0 %147
    %v149 = vmul.f32 %v148, %v143
    %v150 = vadd.f32 %v149, 1e-05
    %v151 = vrsqrt.pop %v150
    %v152 = vmul.f32 %v145, %v151
    %v153 = vld [vmem:[%s2 + $0x1] sm:$0x1]
    %v154 = vlaneseq
    %v155 = vshrl.u32 %v154, 7
    %v156 = vsub.s32 0, %v155
    %v157 = vrot.slane %v153, %v156
    %v158 = vmul.f32 %v152, %v157
    %v159 = vld [vmem:[%s2 + $0x2] sm:$0x1]
    %v160 = vlaneseq
    %v161 = vshrl.u32 %v160, 7
    %v162 = vsub.s32 0, %v161
    %v163 = vrot.slane %v159, %v162
    %v164 = vadd.f32 %v158, %v163
    %v165 = vmul.f32 %v164, 0.5
    %v166 = vmul.f32 %v164, 0.70710677
    %v167 = verf.f32.pop %v166
    %v168 = vadd.f32 %v167, 1.0
    %v169 = vmul.f32 %v165, %v168
    %170 = vst [vmem:[#allocation5] sm:$0xff] %v169
    // Predicated region
    $region18: #{tpu_custom_call.1} parent=1 // pred_check
      _
    $region19: #{tpu_custom_call.1} parent=1 // pred_check_branch
      %172 = sbr.rel (0) target = $region21
    $region20: #{tpu_custom_call.1} parent=1 // pred_region
      %s174 = ssub.s32 128, 128
      %175 = vsyncadd [#allocation4], %s174
      %s177 = sshll.u32 [#allocation5], 4
      %s178 = int_to_ptr.vmem [resolvable:$true] %s177
      %180 = dma.vmem_to_hbm [thread:$0]  %s178, 128, %s3, [#allocation4]
    $region21: #{tpu_custom_call.1} parent=1 // pred_fallthru
      _
    // Predicated region
    $region22: #{tpu_custom_call.1} parent=1 // pred_check
      _
    $region23: #{tpu_custom_call.1} parent=1 // pred_check_branch
      %182 = sbr.rel (0) target = $region25
    $region24: #{tpu_custom_call.1} parent=1 // pred_region
      %183 = dma.done [#allocation4], 128
    $region25: #{tpu_custom_call.1} parent=1 // pred_fallthru
      _
    %184 = vsyncpa [#allocation3], 1
    %185 = vsyncpa [#allocation4], 1

</llo_original>
